<compile_context>
chip_gen: v5e
topology: v5e:2x2
jax: 0.10.0
libtpu: 0.0.40
codegen_flags: <defaults>
</compile_context>

<pallas_src>
import jax
import jax.numpy as jnp
from jax.experimental import pallas as pl
from jax.experimental.pallas import tpu as pltpu

# PyTorch nn.LayerNorm default eps.
# TODO(synk): slp's custom LayerNorm may use eps=1e-6 / (std + eps); pass eps= if so.
LN_EPS = 1e-5


def _round_up(a, b):
    return ((a + b - 1) // b) * b


def _pick_tm(M, n_in, n_out_pad, x_itemsize, w_itemsize,
             vmem_budget=48 * 1024 * 1024, tm_max=512):
    """Largest row tile (multiple of 8, capped at tm_max) whose double-buffered
    x/out tiles plus the resident weight + params fit in the VMEM budget."""
    fixed = 2 * n_in * n_out_pad * w_itemsize + 2 * 3 * n_out_pad * 4
    per_row = 2 * (n_in + n_out_pad) * x_itemsize
    avail = max(vmem_budget - fixed, per_row * 8)
    tm = min(tm_max, avail // per_row, _round_up(M, 8))
    return max(8, (int(tm) // 8) * 8)


def _make_ff_kernel(n_out_true, n_out_pad, eps):
    needs_mask = n_out_pad != n_out_true
    inv_n = 1.0 / float(n_out_true)

    def ff_kernel(x_ref, w_ref, p_ref, o_ref):
        # x_ref: (tm, n_in)        row tile of the flattened input
        # w_ref: (n_in, n_out_pad) full weight (constant across the grid)
        # p_ref: (3, n_out_pad)    packed [bias; gamma; beta] (f32)
        # o_ref: (tm, n_out_pad)   lane-dense output tile
        # Native-dtype operands into the MXU, f32 accumulation.
        y = jnp.dot(x_ref[...], w_ref[...], preferred_element_type=jnp.float32)
        p = p_ref[...]
        bias, gamma, beta = p[0:1, :], p[1:2, :], p[2:3, :]
        y = y + bias

        # Dropout: identity in eval mode.

        # LayerNorm over the true n_out (padded lanes of y are exactly 0 because
        # the padded W columns / bias entries are 0).
        mean = jnp.sum(y, axis=-1, keepdims=True) * inv_n
        centered = y - mean
        if needs_mask:
            lane = jax.lax.broadcasted_iota(jnp.int32, (1, n_out_pad), 1)
            centered = jnp.where(lane < n_out_true, centered, 0.0)
        var = jnp.sum(centered * centered, axis=-1, keepdims=True) * inv_n
        y_hat = centered * jax.lax.rsqrt(var + eps)
        out = jnp.maximum(y_hat * gamma + beta, 0.0)          # ReLU
        o_ref[...] = out.astype(o_ref.dtype)

    return ff_kernel


def ff_forward(x, w, b, gamma, beta, *, eps=LN_EPS, tm=None):
    """Fused Linear -> Dropout(eval) -> LayerNorm -> ReLU.
    x: (B, S, n_in) -> (B, S, n_out)."""
    B, S, n_in = x.shape
    n_in_w, n_out = w.shape
    assert n_in_w == n_in
    M = B * S

    # Lane-dense output: pad the feature dim to a multiple of 128.
    n_out_pad = _round_up(n_out, 128)

    if tm is None:
        tm = _pick_tm(M, n_in, n_out_pad, x.dtype.itemsize, w.dtype.itemsize)
    tm = max(8, (int(tm) // 8) * 8)
    M_pad = _round_up(M, tm)

    x2d = x.reshape(M, n_in)
    if M_pad != M:
        x2d = jnp.pad(x2d, ((0, M_pad - M), (0, 0)))

    w_p = w
    if n_out_pad != n_out:
        w_p = jnp.pad(w, ((0, 0), (0, n_out_pad - n_out)))

    def _pad1(v):
        v = v.astype(jnp.float32).reshape(1, n_out)
        if n_out_pad != n_out:
            v = jnp.pad(v, ((0, 0), (0, n_out_pad - n_out)))
        return v

    params = jnp.concatenate([_pad1(b), _pad1(gamma), _pad1(beta)], axis=0)  # (3, n_out_pad)

    # Working-set estimate: double-buffered x/out tiles + double-buffered W + params.
    xi = x.dtype.itemsize
    work_bytes = (2 * tm * n_in * xi + 2 * tm * n_out_pad * xi
                  + 2 * n_in * n_out_pad * w.dtype.itemsize + 2 * 3 * n_out_pad * 4)
    cp_kwargs = dict(dimension_semantics=("parallel",))
    if work_bytes > 32 * 1024 * 1024:
        # Raise the scoped-VMEM limit; cap at 64 MiB so v7x (64 MiB/TC) is safe.
        cp_kwargs["vmem_limit_bytes"] = min(int(work_bytes * 5 // 4), 64 * 1024 * 1024)

    kernel = _make_ff_kernel(n_out, n_out_pad, float(eps))

    out2d = pl.pallas_call(
        kernel,
        out_shape=jax.ShapeDtypeStruct((M_pad, n_out_pad), x.dtype),
        grid_spec=pltpu.PrefetchScalarGridSpec(
            num_scalar_prefetch=0,
            grid=(M_pad // tm,),
            in_specs=[
                pl.BlockSpec((tm, n_in), lambda i: (i, 0)),          # x row tile
                pl.BlockSpec((n_in, n_out_pad), lambda i: (0, 0)),   # full W (constant)
                pl.BlockSpec((3, n_out_pad), lambda i: (0, 0)),      # [b; gamma; beta]
            ],
            out_specs=pl.BlockSpec((tm, n_out_pad), lambda i: (i, 0)),
        ),
        compiler_params=pltpu.CompilerParams(**cp_kwargs),
    )(x2d, w_p, params)

    return out2d[:M, :n_out].reshape(B, S, n_out)


def ff_reference(x, w, b, gamma, beta, eps=LN_EPS):
    y = jnp.einsum("bsi,io->bso", x, w) + b
    mean = jnp.mean(y, axis=-1, keepdims=True)
    var = jnp.mean((y - mean) ** 2, axis=-1, keepdims=True)
    y = (y - mean) * jax.lax.rsqrt(var + eps)
    y = y * gamma + beta
    return jnp.maximum(y, 0.0)


if __name__ == "__main__":
    # Case 1: small shapes consistent with FF(n_in=32, n_out=64), batch=2, seq=8.
    B, S, n_in, n_out = 2, 8, 32, 64
    kx, kw, kb = jax.random.split(jax.random.PRNGKey(0), 3)
    x = jax.random.normal(kx, (B, S, n_in), dtype=jnp.float32)
    bound = 1.0 / (n_in ** 0.5)                 # nn.Linear-style init
    w = jax.random.uniform(kw, (n_in, n_out), jnp.float32, -bound, bound)
    b = jax.random.uniform(kb, (n_out,), jnp.float32, -bound, bound)
    gamma = jnp.ones((n_out,), jnp.float32)     # LayerNorm default affine init
    beta = jnp.zeros((n_out,), jnp.float32)

    out = jax.block_until_ready(ff_forward(x, w, b, gamma, beta))
    ref = ff_reference(x, w, b, gamma, beta)
    assert out.shape == (B, S, n_out)
    assert jnp.allclose(out, ref, atol=1e-5, rtol=1e-5), "case 1 mismatch vs reference"

    # Case 2: exercises row padding (M=200 not a tile multiple), feature padding
    # (192 -> 256 lanes), a multi-step grid (tm=64), and non-trivial LN affine.
    B2, S2, n_in2, n_out2 = 2, 100, 96, 192
    k1, k2, k3, k4, k5 = jax.random.split(jax.random.PRNGKey(1), 5)
    x2 = jax.random.normal(k1, (B2, S2, n_in2), dtype=jnp.float32)
    bound2 = 1.0 / (n_in2 ** 0.5)
    w2 = jax.random.uniform(k2, (n_in2, n_out2), jnp.float32, -bound2, bound2)
    b2 = jax.random.uniform(k3, (n_out2,), jnp.float32, -bound2, bound2)
    gamma2 = 1.0 + 0.1 * jax.random.normal(k4, (n_out2,), jnp.float32)
    beta2 = 0.05 * jax.random.normal(k5, (n_out2,), jnp.float32)

    out2 = jax.block_until_ready(ff_forward(x2, w2, b2, gamma2, beta2, tm=64))
    ref2 = ff_reference(x2, w2, b2, gamma2, beta2)
    assert out2.shape == (B2, S2, n_out2)
    assert jnp.allclose(out2, ref2, atol=1e-4, rtol=1e-4), "case 2 mismatch vs reference"

    print("KERNEL_OK")
</pallas_src>

<mosaic_0001>
module attributes {stable_mosaic.version = 11 : i64} {
  func.func @ff_kernel(%arg0: i32, %arg1: memref<16x32xf32, #tpu.memory_space<vmem>>, %arg2: memref<32x128xf32, #tpu.memory_space<vmem>>, %arg3: memref<3x128xf32, #tpu.memory_space<vmem>>, %arg4: memref<16x128xf32, #tpu.memory_space<vmem>>) attributes {dimension_semantics = [#tpu.dimension_semantics<parallel>], iteration_bounds = array<i64: 1>, scalar_prefetch = 0 : i64, scratch_operands = 0 : i64, tpu.core_type = #tpu.core_type<tc>, window_params = [{transform_indices = @transform_0, window_bounds = array<i64: 16, 32>}, {pipeline_mode = #tpu.pipeline_mode<synchronous>, transform_indices = @transform_1, window_bounds = array<i64: 32, 128>}, {pipeline_mode = #tpu.pipeline_mode<synchronous>, transform_indices = @transform_2, window_bounds = array<i64: 3, 128>}, {transform_indices = @transform_3, window_bounds = array<i64: 16, 128>}]} {
    %c0 = arith.constant 0 : index
    %c0_0 = arith.constant 0 : index
    %0 = vector.load %arg1[%c0, %c0_0] : memref<16x32xf32, #tpu.memory_space<vmem>>, vector<16x32xf32>
    %c0_1 = arith.constant 0 : index
    %c0_2 = arith.constant 0 : index
    %1 = vector.load %arg2[%c0_1, %c0_2] : memref<32x128xf32, #tpu.memory_space<vmem>>, vector<32x128xf32>
    %cst = arith.constant dense<0.000000e+00> : vector<16x128xf32>
    %2 = tpu.matmul %0, %1, %cst {dimension_numbers = #tpu.dot_dimension_numbers<[1], [0], [0], [1], [0, 0, 1, 1], [], []>} : vector<16x32xf32>, vector<32x128xf32>, vector<16x128xf32> -> vector<16x128xf32>
    %c0_3 = arith.constant 0 : index
    %c0_4 = arith.constant 0 : index
    %3 = vector.load %arg3[%c0_3, %c0_4] : memref<3x128xf32, #tpu.memory_space<vmem>>, vector<3x128xf32>
    %4 = vector.extract_strided_slice %3 {offsets = [0, 0], sizes = [1, 128], strides = [1, 1]} : vector<3x128xf32> to vector<1x128xf32>
    %5 = vector.extract_strided_slice %3 {offsets = [1, 0], sizes = [1, 128], strides = [1, 1]} : vector<3x128xf32> to vector<1x128xf32>
    %6 = vector.extract_strided_slice %3 {offsets = [2, 0], sizes = [1, 128], strides = [1, 1]} : vector<3x128xf32> to vector<1x128xf32>
    %7 = vector.broadcast %4 : vector<1x128xf32> to vector<16x128xf32>
    %8 = arith.addf %2, %7 : vector<16x128xf32>
    %cst_5 = arith.constant dense<0.000000e+00> : vector<16xf32>
    %9 = vector.multi_reduction <add>, %8, %cst_5 [1] : vector<16x128xf32> to vector<16xf32>
    %10 = vector.shape_cast %9 : vector<16xf32> to vector<16x1xf32>
    %cst_6 = arith.constant 1.562500e-02 : f32
    %11 = vector.broadcast %cst_6 : f32 to vector<16x1xf32>
    %12 = arith.mulf %10, %11 : vector<16x1xf32>
    %13 = vector.broadcast %12 : vector<16x1xf32> to vector<16x128xf32>
    %14 = arith.subf %8, %13 : vector<16x128xf32>
    %15 = tpu.iota {dimensions = array<i32: 1>} : vector<1x128xi32>
    %c64_i32 = arith.constant 64 : i32
    %16 = vector.broadcast %c64_i32 : i32 to vector<1x128xi32>
    %17 = arith.cmpi slt, %15, %16 : vector<1x128xi32>
    %cst_7 = arith.constant 0.000000e+00 : f32
    %18 = vector.shape_cast %17 : vector<1x128xi1> to vector<1x128xi1>
    %19 = vector.broadcast %18 : vector<1x128xi1> to vector<16x128xi1>
    %20 = vector.broadcast %cst_7 : f32 to vector<16x128xf32>
    %21 = arith.select %19, %14, %20 : vector<16x128xi1>, vector<16x128xf32>
    %22 = arith.mulf %21, %21 : vector<16x128xf32>
    %cst_8 = arith.constant dense<0.000000e+00> : vector<16xf32>
    %23 = vector.multi_reduction <add>, %22, %cst_8 [1] : vector<16x128xf32> to vector<16xf32>
    %24 = vector.shape_cast %23 : vector<16xf32> to vector<16x1xf32>
    %cst_9 = arith.constant 1.562500e-02 : f32
    %25 = vector.broadcast %cst_9 : f32 to vector<16x1xf32>
    %26 = arith.mulf %24, %25 : vector<16x1xf32>
    %cst_10 = arith.constant 9.99999974E-6 : f32
    %27 = vector.broadcast %cst_10 : f32 to vector<16x1xf32>
    %28 = arith.addf %26, %27 : vector<16x1xf32>
    %29 = math.rsqrt %28 : vector<16x1xf32>
    %30 = vector.broadcast %29 : vector<16x1xf32> to vector<16x128xf32>
    %31 = arith.mulf %21, %30 : vector<16x128xf32>
    %32 = vector.broadcast %5 : vector<1x128xf32> to vector<16x128xf32>
    %33 = arith.mulf %31, %32 : vector<16x128xf32>
    %34 = vector.broadcast %6 : vector<1x128xf32> to vector<16x128xf32>
    %35 = arith.addf %33, %34 : vector<16x128xf32>
    %cst_11 = arith.constant 0.000000e+00 : f32
    %36 = vector.broadcast %cst_11 : f32 to vector<16x128xf32>
    %37 = arith.maximumf %35, %36 : vector<16x128xf32>
    %c0_12 = arith.constant 0 : index
    %c0_13 = arith.constant 0 : index
    %38 = vector.load %arg4[%c0_12, %c0_13] : memref<16x128xf32, #tpu.memory_space<vmem>>, vector<16x128xf32>
    tpu.vector_store %arg4[%c0_12, %c0_13], %37 {strides = array<i32>} : memref<16x128xf32, #tpu.memory_space<vmem>>, vector<16x128xf32>,
    return
  }
  func.func @transform_0(%arg0: i32) -> (i32, i32) {
    %c0_i32 = arith.constant 0 : i32
    %c0_i32_0 = arith.constant 0 : i32
    return %arg0, %c0_i32 : i32, i32
  }
  func.func @transform_1(%arg0: i32) -> (i32, i32) {
    %c0_i32 = arith.constant 0 : i32
    %c0_i32_0 = arith.constant 0 : i32
    %c0_i32_1 = arith.constant 0 : i32
    return %c0_i32, %c0_i32_0 : i32, i32
  }
  func.func @transform_2(%arg0: i32) -> (i32, i32) {
    %c0_i32 = arith.constant 0 : i32
    %c0_i32_0 = arith.constant 0 : i32
    %c0_i32_1 = arith.constant 0 : i32
    return %c0_i32, %c0_i32_0 : i32, i32
  }
  func.func @transform_3(%arg0: i32) -> (i32, i32) {
    %c0_i32 = arith.constant 0 : i32
    %c0_i32_0 = arith.constant 0 : i32
    return %arg0, %c0_i32 : i32, i32
  }
}

</mosaic_0001>

<llo_original>
// kernel: tpu_custom_call.1
$region0: #{tpu_custom_call.1}
  #allocation0 [shape = 'u32[]', space=smem, size = 0x4, offset = 0x4, fixed_abs, tag = 'smem constant byte address 0x4 - core index']
  #allocation1 [shape = 'u32[72,128]{1,0:T(1,128)}', space=vmem, size = 0x9000, scoped, tag = 'internal scratch']
  %s0 = inlined_call_operand.hbm [shape: f32[16,32], index: 0, kind: input, shape index: {}]
  %s1 = inlined_call_operand.hbm [shape: f32[32,128], index: 1, kind: input, shape index: {}]
  %s2 = inlined_call_operand.hbm [shape: f32[3,128], index: 2, kind: input, shape index: {}]
  %s3 = inlined_call_operand.hbm [shape: f32[16,128], index: 3, kind: output, shape index: {}]
  %s4 = sld [smem:[#allocation0]]
  $region34: #{tpu_custom_call.1} parent=0
    _
  %s6 = ssub.s32 1, %s4
  %s7 = scalar_select 0, %s6, %s4
  $region1: #{tpu_custom_call.1} parent=0
    #allocation2 [shape = 'u8[8192]{0}', space=vmem, size = 0x2000, scoped, tag = 'input window, operand 0, single buffered']
    #allocation3 [shape = 's32[1]{0}', space=sflag, size = 0x4, scoped, tag = 'scoped memory for tpu_custom_call.1']
    #allocation4 [shape = 's32[1]{0}', space=sflag, size = 0x4, scoped, tag = 'scoped memory for tpu_custom_call.1']
    #allocation5 [shape = 'u8[16384]{0}', space=vmem, size = 0x4000, scoped, tag = 'input window, operand 1, single buffered']
    #allocation6 [shape = 's32[1]{0}', space=sflag, size = 0x4, scoped, tag = 'scoped memory for tpu_custom_call.1']
    #allocation7 [shape = 'u8[2048]{0}', space=vmem, size = 0x800, scoped, tag = 'input window, operand 2, single buffered']
    #allocation8 [shape = 'u8[8192]{0}', space=vmem, size = 0x2000, scoped, tag = 'output window, operand 0, single buffered']
    %8 = vsyncpa [#allocation3], 0
    %9 = vsyncpa [#allocation6], 0
    %10 = vsyncpa [#allocation4], 0
    // Predicated region
    $region2: #{tpu_custom_call.1} parent=1 // pred_check
      _
    $region3: #{tpu_custom_call.1} parent=1 // pred_check_branch
      %12 = sbr.rel (0) target = $region5
    $region4: #{tpu_custom_call.1} parent=1 // pred_region
      %14 = vsyncadd [#allocation3], 0
      %s15 = sshll.u32 %s0, 4
      %s16 = int_to_ptr.hbm [resolvable:$true] %s15
      %s17 = sshll.u32 [#allocation2], 4
      %s18 = int_to_ptr.vmem [resolvable:$true] %s17
      %23 = dma.hbm_to_vmem [thread:$0]  %s16, 256, %s18, [#allocation3], 128, 128, 8
    $region5: #{tpu_custom_call.1} parent=1 // pred_fallthru
      _
    // Predicated region
    $region6: #{tpu_custom_call.1} parent=1 // pred_check
      _
    $region7: #{tpu_custom_call.1} parent=1 // pred_check_branch
      %25 = sbr.rel (0) target = $region9
    $region8: #{tpu_custom_call.1} parent=1 // pred_region
      %27 = vsyncadd [#allocation6], 0
      %s28 = sshll.u32 %s1, 4
      %s29 = int_to_ptr.hbm [resolvable:$true] %s28
      %s30 = sshll.u32 [#allocation5], 4
      %s31 = int_to_ptr.vmem [resolvable:$true] %s30
      %36 = dma.hbm_to_vmem [thread:$0]  %s29, 512, %s31, [#allocation6], 128, 128, 8
    $region9: #{tpu_custom_call.1} parent=1 // pred_fallthru
      _
    // Predicated region
    $region10: #{tpu_custom_call.1} parent=1 // pred_check
      _
    $region11: #{tpu_custom_call.1} parent=1 // pred_check_branch
      %38 = sbr.rel (0) target = $region13
    $region12: #{tpu_custom_call.1} parent=1 // pred_region
      %40 = vsyncadd [#allocation6], 0
      %s42 = sshll.u32 %s2, 4
      %s43 = int_to_ptr.hbm [resolvable:$true] %s42
      %s44 = sshll.u32 [#allocation7], 4
      %s45 = int_to_ptr.vmem [resolvable:$true] %s44
      %47 = dma.hbm_to_vmem [thread:$0]  %s43, 64, %s45, [#allocation6]
    $region13: #{tpu_custom_call.1} parent=1 // pred_fallthru
      _
    // Predicated region
    $region14: #{tpu_custom_call.1} parent=1 // pred_check
      _
    $region15: #{tpu_custom_call.1} parent=1 // pred_check_branch
      %49 = sbr.rel (0) target = $region17
    $region16: #{tpu_custom_call.1} parent=1 // pred_region
      %51 = dma.done [#allocation3], 256
    $region17: #{tpu_custom_call.1} parent=1 // pred_fallthru
      _
    // Predicated region
    $region18: #{tpu_custom_call.1} parent=1 // pred_check
      _
    $region19: #{tpu_custom_call.1} parent=1 // pred_check_branch
      %53 = sbr.rel (0) target = $region21
    $region20: #{tpu_custom_call.1} parent=1 // pred_region
      %55 = dma.done [#allocation6], 512
    $region21: #{tpu_custom_call.1} parent=1 // pred_fallthru
      _
    // Predicated region
    $region22: #{tpu_custom_call.1} parent=1 // pred_check
      _
    $region23: #{tpu_custom_call.1} parent=1 // pred_check_branch
      %57 = sbr.rel (0) target = $region25
    $region24: #{tpu_custom_call.1} parent=1 // pred_region
      %59 = dma.done [#allocation6], 64
    $region25: #{tpu_custom_call.1} parent=1 // pred_fallthru
      _
    %v60 = vld [vmem:[#allocation2] sm:$0xff]
    %v61 = vld [vmem:[#allocation2 + $0x8] sm:$0xff]
    %v62 = vld [vmem:[#allocation5] sm:$0xff]
    %v63 = vld [vmem:[#allocation5 + $0x8] sm:$0xff]
    %v64 = vld [vmem:[#allocation5 + $0x10] sm:$0xff]
    %v65 = vld [vmem:[#allocation5 + $0x18] sm:$0xff]
    %v66 = vld [vmem:[#allocation7] sm:$0x7]
    %v67 = vperm.slane %v66, 0
    %vm68 = vcmask 261120
    %v70 = vsel %vm68, %v60, 0
    %v73 = vsel %vm68, %v61, 0
    %75 = vmatpush.msra.mxu0 0.0
    %76 = vmatpush.msra.mxu0 0.0
    %77 = vmatpush.msra.mxu0 0.0
    %78 = vmatpush.msra.mxu0 0.0
    %79 = vmatpush.msra.mxu0 0.0
    %80 = vmatpush.msra.mxu0 0.0
    %81 = vmatpush.msra.mxu0 0.0
    %82 = vmatpush.msra.mxu0 0.0
    %83 = vmatpush.msra.mxu0 0.0
    %84 = vmatpush.msra.mxu0 0.0
    %85 = vmatpush.msra.mxu0 0.0
    %86 = vmatpush.msra.mxu0 0.0
    %87 = vmatpush.msra.mxu0 %v65
    %88 = vmatpush.msra.mxu0 %v64
    %89 = vmatpush.msra.mxu0 %v63
    %90 = vmatpush.msra.mxu0 %v62
    %91 = vmatmul.f32.gmra.mxu0 %v70
    %v92 = vpop.f32.mrf.mxu0
    %v93 = vadd.f32 %v67, %v92
    %94 = vmatmul.f32.gmra.mxu0 %v73
    %v95 = vpop.f32.mrf.mxu0
    %v96 = vadd.f32 %v67, %v95
    %97 = vdwg.mxu0
    %98 = vadd.xlane.f32.xlu0 %v93
    %v99 = vpop.xlane.xlu0 %98
    %100 = vadd.xlane.f32.xlu0 %v96
    %v101 = vpop.xlane.xlu0 %100
    %v102 = vmul.f32 %v99, 0.015625
    %v103 = vmul.f32 %v101, 0.015625
    %v104 = vsub.f32 %v93, %v102
    %v105 = vsub.f32 %v96, %v103
    %v106 = vlaneseq
    %v107 = vand.u32 %v106, 127
    %vm108 = vcmp.lt.s32.totalorder %v107, 64
    %v109 = vsel %vm108, 1, 0
    %vm110 = vcmp.eq.s32.totalorder %v109, 1
    %v111 = vsel %vm110, %v104, 0.0
    %v112 = vsel %vm110, %v105, 0.0
    %v113 = vmul.f32 %v111, %v111
    %v114 = vmul.f32 %v112, %v112
    %115 = vadd.xlane.f32.xlu0 %v113
    %v116 = vpop.xlane.xlu0 %115
    %117 = vadd.xlane.f32.xlu0 %v114
    %v118 = vpop.xlane.xlu0 %117
    %v119 = vmul.f32 %v116, 0.015625
    %v120 = vmul.f32 %v118, 0.015625
    %v121 = vadd.f32 %v119, 1e-05
    %v122 = vadd.f32 %v120, 1e-05
    %v123 = vrsqrt.pop %v121
    %v124 = vmul.f32 %v123, %v121
    %v125 = vmul.f32 %v124, %v123
    %v126 = vmul.f32 0.5, %v125
    %v127 = vsub.f32 1.5, %v126
    %v128 = vmul.f32 %v123, %v127
    %vm129 = vweird.f32 %v121
    %vm130 = vweird.f32 %v123
    %vm131 = vmor %vm129, %vm130
    %v132 = vsel %vm131, %v123, %v128
    %v133 = vrsqrt.pop %v122
    %v134 = vmul.f32 %v133, %v122
    %v135 = vmul.f32 %v134, %v133
    %v136 = vmul.f32 0.5, %v135
    %v137 = vsub.f32 1.5, %v136
    %v138 = vmul.f32 %v133, %v137
    %vm139 = vweird.f32 %v122
    %vm140 = vweird.f32 %v133
    %vm141 = vmor %vm139, %vm140
    %v142 = vsel %vm141, %v133, %v138
    %v143 = vmul.f32 %v111, %v132
    %v144 = vmul.f32 %v112, %v142
    %v145 = vperm.slane %v66, 1
    %v146 = vmul.f32 %v143, %v145
    %v147 = vmul.f32 %v144, %v145
    %v148 = vperm.slane %v66, 2
    %v149 = vadd.f32 %v146, %v148
    %v150 = vadd.f32 %v147, %v148
    %v151 = vmax.f32 %v149, 0.0
    %v152 = vmax.f32 %v150, 0.0
    %153 = vst [vmem:[#allocation8] sm:$0xff] %v151
    %154 = vst [vmem:[#allocation8 + $0x8] sm:$0xff] %v152
    // Predicated region
    $region26: #{tpu_custom_call.1} parent=1 // pred_check
      _
    $region27: #{tpu_custom_call.1} parent=1 // pred_check_branch
      %156 = sbr.rel (0) target = $region29
    $region28: #{tpu_custom_call.1} parent=1 // pred_region
      %158 = vsyncadd [#allocation4], 0
      %s159 = sshll.u32 [#allocation8], 4
      %s160 = int_to_ptr.vmem [resolvable:$true] %s159
      %s161 = sshll.u32 %s3, 4
      %s162 = int_to_ptr.hbm [resolvable:$true] %s161
      %167 = dma.vmem_to_hbm [thread:$0]  %s160, 256, %s162, [#allocation4], 128, 128, 8
    $region29: #{tpu_custom_call.1} parent=1 // pred_fallthru
      _
    // Predicated region
    $region30: #{tpu_custom_call.1} parent=1 // pred_check
      _
    $region31: #{tpu_custom_call.1} parent=1 // pred_check_branch
      %169 = sbr.rel (0) target = $region33
    $region32: #{tpu_custom_call.1} parent=1 // pred_region
      %171 = dma.done [#allocation4], 256
    $region33: #{tpu_custom_call.1} parent=1 // pred_fallthru
      _
    %172 = vsyncpa [#allocation3], 1
    %173 = vsyncpa [#allocation6], 1
    %174 = vsyncpa [#allocation4], 1

</llo_original>
